<compile_context>
chip_gen: v6e
topology: v6e:2x2x1
jax: 0.10.0
libtpu: 0.0.40
codegen_flags: <defaults>
</compile_context>

<pallas_src>
import functools

import jax
import jax.numpy as jnp
from jax import lax
from jax.experimental import pallas as pl
from jax.experimental.pallas import tpu as pltpu


def _attn_head_kernel(x_ref, wqkv_ref, o_ref, *, B, T, H):
    """Fused QKV projection + block-diagonal causal attention for all batches at once.

    x_ref:    (B*T, C)  f32
    wqkv_ref: (C, 3H)   f32   (emb_dim**-0.5 already folded into the K columns)
    o_ref:    (B*T, H)  f32
    """
    N = B * T
    x = x_ref[...]
    w = wqkv_ref[...]

    # One MXU push for the whole projection: (N, C) @ (C, 3H).
    qkv = jnp.dot(x, w, preferred_element_type=jnp.float32)   # (N, 3H)
    q = qkv[:, 0:H]
    k = qkv[:, H:2 * H]            # already carries the emb_dim**-0.5 scale
    v = qkv[:, 2 * H:3 * H]

    # Block-diagonal (same-batch) AND causal mask over the flattened (N, N) scores.
    # Built with compares/ANDs only (no integer division) for guaranteed lowering.
    row = lax.broadcasted_iota(jnp.int32, (N, N), 0)
    col = lax.broadcasted_iota(jnp.int32, (N, N), 1)
    same = None
    for b in range(B):             # trace-time unroll; only a running bool vreg stays live
        lo, hi = b * T, (b + 1) * T
        blk = (row >= lo) & (row < hi) & (col >= lo) & (col < hi)
        same = blk if same is None else (same | blk)
    mask = same & (col <= row)     # within one batch, global col<=row == causal

    # wei[i, j] = K[i] . Q[j] — contract last axes directly on the MXU (no transpose temp).
    wei = lax.dot_general(
        k, q,
        dimension_numbers=(((1,), (1,)), ((), ())),
        preferred_element_type=jnp.float32,
    )                              # (N, N)
    wei = jnp.where(mask, wei, -jnp.inf)   # diagonal always unmasked -> no NaN risk

    # Numerically stable softmax over the last axis; cross-batch -inf entries become
    # probability 0, so this equals the per-batch softmax exactly.
    m = jnp.max(wei, axis=-1, keepdims=True)
    e = jnp.exp(wei - m)
    s = jnp.sum(e, axis=-1, keepdims=True)
    r = pl.reciprocal(s, approx=True)      # EUP vrcp (otherwise-idle slot)
    r = r * (2.0 - s * r)                  # one Newton step -> well inside 1e-5 tolerance
    p = e * r

    # Dropout(p=0.0) is the identity; single full-tile store of the result.
    o_ref[...] = jnp.dot(p, v, preferred_element_type=jnp.float32).astype(o_ref.dtype)


def prepare_qkv_weight(w_q, w_k, w_v, emb_dim):
    """One-time weight transform (hoisted out of the per-call path).

    Concatenates the Q/K/V weights (each stored as (C, H) == torch weight.T) into a single
    (C, 3H) matrix and folds the emb_dim**-0.5 score scale into the K columns.
    """
    scale = float(emb_dim) ** -0.5
    return jnp.concatenate([w_q, w_k * scale, w_v], axis=1)   # (C, 3H)


def self_attention_head(x, w_qkv, head_size):
    """x: (B, T, C) float32; w_qkv: (C, 3*head_size) from prepare_qkv_weight. Returns (B, T, H)."""
    B, T, C = x.shape
    H = head_size

    x2 = x.reshape(B * T, C)       # flatten batch*seq so the whole head is one kernel step

    kernel = functools.partial(_attn_head_kernel, B=B, T=T, H=H)

    out2 = pl.pallas_call(
        kernel,
        out_shape=jax.ShapeDtypeStruct((B * T, H), x.dtype),
        grid_spec=pltpu.PrefetchScalarGridSpec(
            num_scalar_prefetch=0,
            grid=(1,),                                    # single step: whole problem in VMEM
            in_specs=[
                pl.BlockSpec((B * T, C), lambda i: (0, 0)),
                pl.BlockSpec((C, 3 * H), lambda i: (0, 0)),
            ],
            out_specs=pl.BlockSpec((B * T, H), lambda i: (0, 0)),
        ),
        compiler_params=pltpu.CompilerParams(
            dimension_semantics=("arbitrary",),
        ),
    )(x2, w_qkv)

    return out2.reshape(B, T, H)


def _reference(x, w_q, w_k, w_v):
    B, T, C = x.shape
    q = x @ w_q
    k = x @ w_k
    v = x @ w_v
    wei = (k @ jnp.swapaxes(q, -2, -1)) * (C ** -0.5)
    tril = jnp.tril(jnp.ones((T, T), dtype=bool))
    wei = jnp.where(tril[None, :, :], wei, -jnp.inf)
    wei = jax.nn.softmax(wei, axis=-1)
    return wei @ v


if __name__ == "__main__":
    # cfg: emb_dim=32, context_size=8, head_size=16, dropout=0.0
    B, T, C, H = 2, 8, 32, 16

    key = jax.random.PRNGKey(0)
    kx, kq, kk, kv = jax.random.split(key, 4)

    x = jax.random.normal(kx, (B, T, C), dtype=jnp.float32)
    # deterministic "Linear" weights, stored as (C, H) == weight.T
    w_q = jax.random.normal(kq, (C, H), dtype=jnp.float32) * (C ** -0.5)
    w_k = jax.random.normal(kk, (C, H), dtype=jnp.float32) * (C ** -0.5)
    w_v = jax.random.normal(kv, (C, H), dtype=jnp.float32) * (C ** -0.5)

    # One-time weight prep (scale folded into K columns), then the per-call kernel.
    w_qkv = prepare_qkv_weight(w_q, w_k, w_v, emb_dim=C)
    w_qkv = jax.block_until_ready(w_qkv)

    out = self_attention_head(x, w_qkv, head_size=H)
    out = jax.block_until_ready(out)

    ref = _reference(x, w_q, w_k, w_v)
    assert out.shape == (B, T, H)
    assert jnp.allclose(out, ref, atol=1e-5, rtol=1e-5), "mismatch vs. pure-JAX reference"

    print("KERNEL_OK")
</pallas_src>

<mosaic_0001>
module attributes {stable_mosaic.version = 11 : i64} {
  func.func @_attn_head_kernel(%arg0: i32, %arg1: memref<16x32xf32, #tpu.memory_space<vmem>>, %arg2: memref<32x48xf32, #tpu.memory_space<vmem>>, %arg3: memref<16x16xf32, #tpu.memory_space<vmem>>) attributes {dimension_semantics = [#tpu.dimension_semantics<arbitrary>], iteration_bounds = array<i64: 1>, scalar_prefetch = 0 : i64, scratch_operands = 0 : i64, tpu.core_type = #tpu.core_type<tc>, window_params = [{pipeline_mode = #tpu.pipeline_mode<synchronous>, transform_indices = @transform_0, window_bounds = array<i64: 16, 32>}, {pipeline_mode = #tpu.pipeline_mode<synchronous>, transform_indices = @transform_1, window_bounds = array<i64: 32, 48>}, {pipeline_mode = #tpu.pipeline_mode<synchronous>, transform_indices = @transform_2, window_bounds = array<i64: 16, 16>}]} {
    %c0 = arith.constant 0 : index
    %c0_0 = arith.constant 0 : index
    %0 = vector.load %arg1[%c0, %c0_0] : memref<16x32xf32, #tpu.memory_space<vmem>>, vector<16x32xf32>
    %c0_1 = arith.constant 0 : index
    %c0_2 = arith.constant 0 : index
    %1 = vector.load %arg2[%c0_1, %c0_2] : memref<32x48xf32, #tpu.memory_space<vmem>>, vector<32x48xf32>
    %cst = arith.constant dense<0.000000e+00> : vector<16x48xf32>
    %2 = tpu.matmul %0, %1, %cst {dimension_numbers = #tpu.dot_dimension_numbers<[1], [0], [0], [1], [0, 0, 1, 1], [], []>} : vector<16x32xf32>, vector<32x48xf32>, vector<16x48xf32> -> vector<16x48xf32>
    %3 = vector.extract_strided_slice %2 {offsets = [0, 0], sizes = [16, 16], strides = [1, 1]} : vector<16x48xf32> to vector<16x16xf32>
    %4 = vector.extract_strided_slice %2 {offsets = [0, 16], sizes = [16, 16], strides = [1, 1]} : vector<16x48xf32> to vector<16x16xf32>
    %5 = vector.extract_strided_slice %2 {offsets = [0, 32], sizes = [16, 16], strides = [1, 1]} : vector<16x48xf32> to vector<16x16xf32>
    %6 = tpu.iota {dimensions = array<i32: 0>} : vector<16x16xi32>
    %7 = tpu.iota {dimensions = array<i32: 1>} : vector<16x16xi32>
    %c0_i32 = arith.constant 0 : i32
    %8 = vector.broadcast %c0_i32 : i32 to vector<16x16xi32>
    %9 = arith.cmpi sge, %6, %8 : vector<16x16xi32>
    %c8_i32 = arith.constant 8 : i32
    %10 = vector.broadcast %c8_i32 : i32 to vector<16x16xi32>
    %11 = arith.cmpi slt, %6, %10 : vector<16x16xi32>
    %12 = arith.andi %9, %11 : vector<16x16xi1>
    %c0_i32_3 = arith.constant 0 : i32
    %13 = vector.broadcast %c0_i32_3 : i32 to vector<16x16xi32>
    %14 = arith.cmpi sge, %7, %13 : vector<16x16xi32>
    %15 = arith.andi %12, %14 : vector<16x16xi1>
    %c8_i32_4 = arith.constant 8 : i32
    %16 = vector.broadcast %c8_i32_4 : i32 to vector<16x16xi32>
    %17 = arith.cmpi slt, %7, %16 : vector<16x16xi32>
    %18 = arith.andi %15, %17 : vector<16x16xi1>
    %c8_i32_5 = arith.constant 8 : i32
    %19 = vector.broadcast %c8_i32_5 : i32 to vector<16x16xi32>
    %20 = arith.cmpi sge, %6, %19 : vector<16x16xi32>
    %c16_i32 = arith.constant 16 : i32
    %21 = vector.broadcast %c16_i32 : i32 to vector<16x16xi32>
    %22 = arith.cmpi slt, %6, %21 : vector<16x16xi32>
    %23 = arith.andi %20, %22 : vector<16x16xi1>
    %c8_i32_6 = arith.constant 8 : i32
    %24 = vector.broadcast %c8_i32_6 : i32 to vector<16x16xi32>
    %25 = arith.cmpi sge, %7, %24 : vector<16x16xi32>
    %26 = arith.andi %23, %25 : vector<16x16xi1>
    %c16_i32_7 = arith.constant 16 : i32
    %27 = vector.broadcast %c16_i32_7 : i32 to vector<16x16xi32>
    %28 = arith.cmpi slt, %7, %27 : vector<16x16xi32>
    %29 = arith.andi %26, %28 : vector<16x16xi1>
    %30 = arith.ori %18, %29 : vector<16x16xi1>
    %31 = arith.cmpi sle, %7, %6 : vector<16x16xi32>
    %32 = arith.andi %30, %31 : vector<16x16xi1>
    %cst_8 = arith.constant dense<0.000000e+00> : vector<16x16xf32>
    %33 = tpu.matmul %4, %3, %cst_8 {dimension_numbers = #tpu.dot_dimension_numbers<[1], [1], [0], [0], [0, 0, 1, 0], [], []>} : vector<16x16xf32>, vector<16x16xf32>, vector<16x16xf32> -> vector<16x16xf32>
    %cst_9 = arith.constant 0xFF800000 : f32
    %34 = vector.broadcast %cst_9 : f32 to vector<16x16xf32>
    %35 = arith.select %32, %33, %34 : vector<16x16xi1>, vector<16x16xf32>
    %cst_10 = arith.constant dense<0xFF800000> : vector<16xf32>
    %36 = vector.multi_reduction <maximumf>, %35, %cst_10 [1] : vector<16x16xf32> to vector<16xf32>
    %37 = vector.shape_cast %36 : vector<16xf32> to vector<16x1xf32>
    %38 = vector.broadcast %37 : vector<16x1xf32> to vector<16x16xf32>
    %39 = arith.subf %35, %38 : vector<16x16xf32>
    %40 = math.exp %39 : vector<16x16xf32>
    %cst_11 = arith.constant dense<0.000000e+00> : vector<16xf32>
    %41 = vector.multi_reduction <add>, %40, %cst_11 [1] : vector<16x16xf32> to vector<16xf32>
    %42 = vector.shape_cast %41 : vector<16xf32> to vector<16x1xf32>
    %43 = tpu.reciprocal %42 {approx = true} : vector<16x1xf32> -> vector<16x1xf32>
    %44 = arith.mulf %42, %43 : vector<16x1xf32>
    %cst_12 = arith.constant 2.000000e+00 : f32
    %45 = vector.broadcast %cst_12 : f32 to vector<16x1xf32>
    %46 = arith.subf %45, %44 : vector<16x1xf32>
    %47 = arith.mulf %43, %46 : vector<16x1xf32>
    %48 = vector.broadcast %47 : vector<16x1xf32> to vector<16x16xf32>
    %49 = arith.mulf %40, %48 : vector<16x16xf32>
    %cst_13 = arith.constant dense<0.000000e+00> : vector<16x16xf32>
    %50 = tpu.matmul %49, %5, %cst_13 {dimension_numbers = #tpu.dot_dimension_numbers<[1], [0], [0], [1], [0, 0, 1, 1], [], []>} : vector<16x16xf32>, vector<16x16xf32>, vector<16x16xf32> -> vector<16x16xf32>
    %c0_14 = arith.constant 0 : index
    %c0_15 = arith.constant 0 : index
    %51 = vector.load %arg3[%c0_14, %c0_15] : memref<16x16xf32, #tpu.memory_space<vmem>>, vector<16x16xf32>
    tpu.vector_store %arg3[%c0_14, %c0_15], %50 {strides = array<i32>} : memref<16x16xf32, #tpu.memory_space<vmem>>, vector<16x16xf32>,
    return
  }
  func.func @transform_0(%arg0: i32) -> (i32, i32) {
    %c0_i32 = arith.constant 0 : i32
    %c0_i32_0 = arith.constant 0 : i32
    %c0_i32_1 = arith.constant 0 : i32
    return %c0_i32, %c0_i32_0 : i32, i32
  }
  func.func @transform_1(%arg0: i32) -> (i32, i32) {
    %c0_i32 = arith.constant 0 : i32
    %c0_i32_0 = arith.constant 0 : i32
    %c0_i32_1 = arith.constant 0 : i32
    return %c0_i32, %c0_i32_0 : i32, i32
  }
  func.func @transform_2(%arg0: i32) -> (i32, i32) {
    %c0_i32 = arith.constant 0 : i32
    %c0_i32_0 = arith.constant 0 : i32
    %c0_i32_1 = arith.constant 0 : i32
    return %c0_i32, %c0_i32_0 : i32, i32
  }
}

</mosaic_0001>

<llo_original>
// kernel: tpu_custom_call.1
$region0: #{tpu_custom_call.1}
  #allocation0 [shape = 'u32[]', space=smem, size = 0x4, offset = 0x4, fixed_abs, tag = 'smem constant byte address 0x4 - core index']
  #allocation1 [shape = 'u32[144,128]{1,0:T(1,128)}', space=vmem, size = 0x12000, scoped, tag = 'internal scratch']
  %s0 = inlined_call_operand.hbm [shape: f32[16,32], index: 0, kind: input, shape index: {}]
  %s1 = inlined_call_operand.hbm [shape: f32[32,48], index: 1, kind: input, shape index: {}]
  %s2 = inlined_call_operand.hbm [shape: f32[16,16], index: 2, kind: output, shape index: {}]
  %s3 = sld [smem:[#allocation0]]
  $region26: #{tpu_custom_call.1} parent=0
    _
  %s5 = ssub.s32 1, %s3
  %s6 = scalar_select 0, %s5, %s3
  $region1: #{tpu_custom_call.1} parent=0
    #allocation2 [shape = 'u8[8192]{0}', space=vmem, size = 0x2000, scoped, tag = 'input window, operand 0, single buffered']
    #allocation3 [shape = 's32[1]{0}', space=sflag, size = 0x4, scoped, tag = 'scoped memory for tpu_custom_call.1']
    #allocation4 [shape = 's32[1]{0}', space=sflag, size = 0x4, scoped, tag = 'scoped memory for tpu_custom_call.1']
    #allocation5 [shape = 'u8[16384]{0}', space=vmem, size = 0x4000, scoped, tag = 'input window, operand 1, single buffered']
    #allocation6 [shape = 's32[1]{0}', space=sflag, size = 0x4, scoped, tag = 'scoped memory for tpu_custom_call.1']
    #allocation7 [shape = 'u8[8192]{0}', space=vmem, size = 0x2000, scoped, tag = 'output window, operand 0, single buffered']
    %7 = vsyncpa [#allocation3], 0
    %8 = vsyncpa [#allocation6], 0
    %9 = vsyncpa [#allocation4], 0
    // Predicated region
    $region2: #{tpu_custom_call.1} parent=1 // pred_check
      _
    $region3: #{tpu_custom_call.1} parent=1 // pred_check_branch
      %11 = sbr.rel (0) target = $region5
    $region4: #{tpu_custom_call.1} parent=1 // pred_region
      %s13 = ssub.s32 256, 256
      %14 = vsyncadd [#allocation3], %s13
      %s15 = sshll.u32 [#allocation2], 4
      %s16 = int_to_ptr.vmem [resolvable:$true] %s15
      %21 = dma.hbm_to_vmem [thread:$0]  %s0, 256, %s16, [#allocation3], 128, 128, 8
    $region5: #{tpu_custom_call.1} parent=1 // pred_fallthru
      _
    // Predicated region
    $region6: #{tpu_custom_call.1} parent=1 // pred_check
      _
    $region7: #{tpu_custom_call.1} parent=1 // pred_check_branch
      %23 = sbr.rel (0) target = $region9
    $region8: #{tpu_custom_call.1} parent=1 // pred_region
      %s25 = ssub.s32 512, 512
      %26 = vsyncadd [#allocation6], %s25
      %s27 = sshll.u32 [#allocation5], 4
      %s28 = int_to_ptr.vmem [resolvable:$true] %s27
      %33 = dma.hbm_to_vmem [thread:$0]  %s1, 512, %s28, [#allocation6], 128, 128, 8
    $region9: #{tpu_custom_call.1} parent=1 // pred_fallthru
      _
    // Predicated region
    $region10: #{tpu_custom_call.1} parent=1 // pred_check
      _
    $region11: #{tpu_custom_call.1} parent=1 // pred_check_branch
      %35 = sbr.rel (0) target = $region13
    $region12: #{tpu_custom_call.1} parent=1 // pred_region
      %36 = dma.done [#allocation3], 256
    $region13: #{tpu_custom_call.1} parent=1 // pred_fallthru
      _
    // Predicated region
    $region14: #{tpu_custom_call.1} parent=1 // pred_check
      _
    $region15: #{tpu_custom_call.1} parent=1 // pred_check_branch
      %38 = sbr.rel (0) target = $region17
    $region16: #{tpu_custom_call.1} parent=1 // pred_region
      %39 = dma.done [#allocation6], 512
    $region17: #{tpu_custom_call.1} parent=1 // pred_fallthru
      _
    %v40 = vld [vmem:[#allocation2] sm:$0xff]
    %v41 = vld [vmem:[#allocation2 + $0x8] sm:$0xff]
    %v42 = vld [vmem:[#allocation5] sm:$0xff]
    %v43 = vld [vmem:[#allocation5 + $0x8] sm:$0xff]
    %v44 = vld [vmem:[#allocation5 + $0x10] sm:$0xff]
    %v45 = vld [vmem:[#allocation5 + $0x18] sm:$0xff]
    %vm46 = vcmask 261120
    %v48 = vsel %vm46, %v40, 0
    %v51 = vsel %vm46, %v41, 0
    %53 = vmatprep.subr.mxu0 0.0
    %54 = vmatpush1.msra.mxu0 0.0
    %55 = vmatprep.subr.mxu0 0.0
    %56 = vmatpush1.msra.mxu0 0.0
    %57 = vmatprep.subr.mxu0 0.0
    %58 = vmatpush1.msra.mxu0 0.0
    %59 = vmatprep.subr.mxu0 0.0
    %60 = vmatpush1.msra.mxu0 0.0
    %61 = vmatprep.subr.mxu0 0.0
    %62 = vmatpush1.msra.mxu0 0.0
    %63 = vmatprep.subr.mxu0 0.0
    %64 = vmatpush1.msra.mxu0 0.0
    %65 = vmatprep.subr.mxu0 0.0
    %66 = vmatpush1.msra.mxu0 0.0
    %67 = vmatprep.subr.mxu0 0.0
    %68 = vmatpush1.msra.mxu0 0.0
    %69 = vmatprep.subr.mxu0 0.0
    %70 = vmatpush1.msra.mxu0 0.0
    %71 = vmatprep.subr.mxu0 0.0
    %72 = vmatpush1.msra.mxu0 0.0
    %73 = vmatprep.subr.mxu0 0.0
    %74 = vmatpush1.msra.mxu0 0.0
    %75 = vmatprep.subr.mxu0 0.0
    %76 = vmatpush1.msra.mxu0 0.0
    %77 = vmatprep.subr.mxu0 0.0
    %78 = vmatpush1.msra.mxu0 %v45
    %79 = vmatprep.subr.mxu0 0.0
    %80 = vmatpush1.msra.mxu0 %v44
    %81 = vmatprep.subr.mxu0 0.0
    %82 = vmatpush1.msra.mxu0 %v43
    %83 = vmatprep.subr.mxu0 0.0
    %84 = vmatpush1.msra.mxu0 %v42
    %85 = vmatprep.subr.mxu0 0.0
    %86 = vmatpush2.msra.mxu0 0.0
    %87 = vmatprep.subr.mxu0 0.0
    %88 = vmatpush2.msra.mxu0 0.0
    %89 = vmatprep.subr.mxu0 0.0
    %90 = vmatpush2.msra.mxu0 0.0
    %91 = vmatprep.subr.mxu0 0.0
    %92 = vmatpush2.msra.mxu0 0.0
    %93 = vmatprep.subr.mxu0 0.0
    %94 = vmatpush2.msra.mxu0 0.0
    %95 = vmatprep.subr.mxu0 0.0
    %96 = vmatpush2.msra.mxu0 0.0
    %97 = vmatprep.subr.mxu0 0.0
    %98 = vmatpush2.msra.mxu0 0.0
    %99 = vmatprep.subr.mxu0 0.0
    %100 = vmatpush2.msra.mxu0 0.0
    %101 = vmatprep.subr.mxu0 0.0
    %102 = vmatpush2.msra.mxu0 0.0
    %103 = vmatprep.subr.mxu0 0.0
    %104 = vmatpush2.msra.mxu0 0.0
    %105 = vmatprep.subr.mxu0 0.0
    %106 = vmatpush2.msra.mxu0 0.0
    %107 = vmatprep.subr.mxu0 0.0
    %108 = vmatpush2.msra.mxu0 0.0
    %109 = vmatprep.subr.mxu0 0.0
    %110 = vmatpush2.msra.mxu0 0.0
    %111 = vmatprep.subr.mxu0 0.0
    %112 = vmatpush2.msra.mxu0 0.0
    %113 = vmatprep.subr.mxu0 0.0
    %114 = vmatpush2.msra.mxu0 0.0
    %115 = vmatprep.subr.mxu0 0.0
    %116 = vmatpush2.msra.mxu0 0.0
    %117 = vmatprep.mubr.f32.mxu0 0.0
    %118 = vmatmul.mubr.f32.gmra.mxu0 %v48
    %v119 = vpop.f32.mrf.mxu0
    %v120 = vadd.f32 0.0, %v119
    %v121 = vpop.f32.mrf.mxu0
    %122 = vmatprep.mubr.f32.mxu0 0.0
    %123 = vmatmul.mubr.f32.gmra.mxu0 %v51
    %v124 = vpop.f32.mrf.mxu0
    %v125 = vadd.f32 0.0, %v124
    %v126 = vpop.f32.mrf.mxu0
    %127 = vdwg.mxu0
    %v128 = vlaneseq
    %v129 = vshrl.u32 %v128, 7
    %v130 = vadd.s32 %v129, 8
    %v131 = vlaneseq
    %v132 = vand.u32 %v131, 127
    %vm133 = vcmp.ge.s32.totalorder %v129, 0
    %vm134 = vcmp.ge.s32.totalorder %v130, 0
    %vm135 = vcmp.lt.s32.totalorder %v129, 8
    %vm136 = vcmp.lt.s32.totalorder %v130, 8
    %vm137 = vmand %vm133, %vm135
    %vm138 = vmand %vm134, %vm136
    %vm139 = vcmp.ge.s32.totalorder %v132, 0
    %vm140 = vmand %vm137, %vm139
    %vm141 = vmand %vm138, %vm139
    %vm142 = vcmp.lt.s32.totalorder %v132, 8
    %vm143 = vmand %vm140, %vm142
    %vm144 = vmand %vm141, %vm142
    %vm145 = vcmp.ge.s32.totalorder %v129, 8
    %vm146 = vcmp.ge.s32.totalorder %v130, 8
    %vm147 = vcmp.lt.s32.totalorder %v129, 16
    %vm148 = vcmp.lt.s32.totalorder %v130, 16
    %vm149 = vmand %vm145, %vm147
    %vm150 = vmand %vm146, %vm148
    %vm151 = vcmp.ge.s32.totalorder %v132, 8
    %vm152 = vmand %vm149, %vm151
    %vm153 = vmand %vm150, %vm151
    %vm154 = vcmp.lt.s32.totalorder %v132, 16
    %vm155 = vmand %vm152, %vm154
    %vm156 = vmand %vm153, %vm154
    %vm157 = vmor %vm143, %vm155
    %vm158 = vmor %vm144, %vm156
    %vm159 = vcmp.le.s32.totalorder %v132, %v129
    %vm160 = vcmp.le.s32.totalorder %v132, %v130
    %vm161 = vmand %vm157, %vm159
    %vm162 = vmand %vm158, %vm160
    %165 = vrot.lane.b32.xlu0 %v120, 112
    %v166 = vpop.permute.xlu0 %165
    %167 = vrot.lane.b32.xlu0 %v125, 112
    %v168 = vpop.permute.xlu0 %167
    %vm169 = vcmask 130048
    %v170 = vsel %vm169, %v166, 0
    %v172 = vsel %vm169, %v168, 0
    %v174 = vsel %vm169, %v120, 0
    %v176 = vsel %vm169, %v125, 0
    %178 = vmatprep.subr.mxu0 0.0
    %179 = vmatpush1.xpose.msra.mxu0 0.0
    %180 = vmatprep.subr.mxu0 0.0
    %181 = vmatpush1.xpose.msra.mxu0 0.0
    %182 = vmatprep.subr.mxu0 0.0
    %183 = vmatpush1.xpose.msra.mxu0 0.0
    %184 = vmatprep.subr.mxu0 0.0
    %185 = vmatpush1.xpose.msra.mxu0 0.0
    %186 = vmatprep.subr.mxu0 0.0
    %187 = vmatpush1.xpose.msra.mxu0 0.0
    %188 = vmatprep.subr.mxu0 0.0
    %189 = vmatpush1.xpose.msra.mxu0 0.0
    %190 = vmatprep.subr.mxu0 0.0
    %191 = vmatpush1.xpose.msra.mxu0 0.0
    %192 = vmatprep.subr.mxu0 0.0
    %193 = vmatpush1.xpose.msra.mxu0 0.0
    %194 = vmatprep.subr.mxu0 0.0
    %195 = vmatpush1.xpose.msra.mxu0 0.0
    %196 = vmatprep.subr.mxu0 0.0
    %197 = vmatpush1.xpose.msra.mxu0 0.0
    %198 = vmatprep.subr.mxu0 0.0
    %199 = vmatpush1.xpose.msra.mxu0 0.0
    %200 = vmatprep.subr.mxu0 0.0
    %201 = vmatpush1.xpose.msra.mxu0 0.0
    %202 = vmatprep.subr.mxu0 0.0
    %203 = vmatpush1.xpose.msra.mxu0 0.0
    %204 = vmatprep.subr.mxu0 0.0
    %205 = vmatpush1.xpose.msra.mxu0 0.0
    %206 = vmatprep.subr.mxu0 0.0
    %207 = vmatpush1.xpose.msra.mxu0 %v176
    %208 = vmatprep.subr.mxu0 0.0
    %209 = vmatpush1.xpose.msra.mxu0 %v174
    %210 = vmatprep.subr.mxu0 0.0
    %211 = vmatpush2.xpose.msra.mxu0 0.0
    %212 = vmatprep.subr.mxu0 0.0
    %213 = vmatpush2.xpose.msra.mxu0 0.0
    %214 = vmatprep.subr.mxu0 0.0
    %215 = vmatpush2.xpose.msra.mxu0 0.0
    %216 = vmatprep.subr.mxu0 0.0
    %217 = vmatpush2.xpose.msra.mxu0 0.0
    %218 = vmatprep.subr.mxu0 0.0
    %219 = vmatpush2.xpose.msra.mxu0 0.0
    %220 = vmatprep.subr.mxu0 0.0
    %221 = vmatpush2.xpose.msra.mxu0 0.0
    %222 = vmatprep.subr.mxu0 0.0
    %223 = vmatpush2.xpose.msra.mxu0 0.0
    %224 = vmatprep.subr.mxu0 0.0
    %225 = vmatpush2.xpose.msra.mxu0 0.0
    %226 = vmatprep.subr.mxu0 0.0
    %227 = vmatpush2.xpose.msra.mxu0 0.0
    %228 = vmatprep.subr.mxu0 0.0
    %229 = vmatpush2.xpose.msra.mxu0 0.0
    %230 = vmatprep.subr.mxu0 0.0
    %231 = vmatpush2.xpose.msra.mxu0 0.0
    %232 = vmatprep.subr.mxu0 0.0
    %233 = vmatpush2.xpose.msra.mxu0 0.0
    %234 = vmatprep.subr.mxu0 0.0
    %235 = vmatpush2.xpose.msra.mxu0 0.0
    %236 = vmatprep.subr.mxu0 0.0
    %237 = vmatpush2.xpose.msra.mxu0 0.0
    %238 = vmatprep.subr.mxu0 0.0
    %239 = vmatpush2.xpose.msra.mxu0 0.0
    %240 = vmatprep.subr.mxu0 0.0
    %241 = vmatpush2.xpose.msra.mxu0 0.0
    %242 = vmatprep.mubr.f32.mxu0 0.0
    %243 = vmatmul.mubr.f32.gmra.mxu0 %v170
    %v244 = vpop.f32.mrf.mxu0
    %v245 = vadd.f32 0.0, %v244
    %v246 = vpop.f32.mrf.mxu0
    %247 = vmatprep.mubr.f32.mxu0 0.0
    %248 = vmatmul.mubr.f32.gmra.mxu0 %v172
    %v249 = vpop.f32.mrf.mxu0
    %v250 = vadd.f32 0.0, %v249
    %v251 = vpop.f32.mrf.mxu0
    %252 = vdwg.mxu0
    %v253 = vsel %vm161, %v245, -inf
    %v254 = vsel %vm162, %v250, -inf
    %v255 = vsel %vm169, %v253, -inf
    %256 = vmax.xlane.f32.xlu0 %v255
    %v257 = vpop.xlane.xlu0 %256
    %v258 = vsel %vm169, %v254, -inf
    %259 = vmax.xlane.f32.xlu0 %v258
    %v260 = vpop.xlane.xlu0 %259
    %v261 = vsub.f32 %v253, %v257
    %v262 = vsub.f32 %v254, %v260
    %v263 = vmul.f32 %v261, 1.442695
    %v264 = vpow.pop %v263
    %v265 = vmul.f32 %v262, 1.442695
    %v266 = vpow.pop %v265
    %v267 = vsel %vm169, %v264, 0.0
    %268 = vadd.xlane.f32.xlu0 %v267
    %v269 = vpop.xlane.xlu0 %268
    %v270 = vsel %vm169, %v266, 0.0
    %271 = vadd.xlane.f32.xlu0 %v270
    %v272 = vpop.xlane.xlu0 %271
    %v273 = vrcp.pop %v269
    %v274 = vrcp.pop %v272
    %v275 = vmul.f32 %v269, %v273
    %v276 = vmul.f32 %v272, %v274
    %v277 = vsub.f32 2.0, %v275
    %v278 = vsub.f32 2.0, %v276
    %v279 = vmul.f32 %v273, %v277
    %v280 = vmul.f32 %v274, %v278
    %v281 = vmul.f32 %v264, %v279
    %v282 = vmul.f32 %v266, %v280
    %283 = vrot.lane.b32.xlu0 %v120, 96
    %v284 = vpop.permute.xlu0 %283
    %285 = vrot.lane.b32.xlu0 %v125, 96
    %v286 = vpop.permute.xlu0 %285
    %v290 = vsel %vm169, %v281, 0
    %v293 = vsel %vm169, %v282, 0
    %295 = vmatprep.subr.mxu0 0.0
    %296 = vmatpush1.msra.mxu0 0.0
    %297 = vmatprep.subr.mxu0 0.0
    %298 = vmatpush1.msra.mxu0 0.0
    %299 = vmatprep.subr.mxu0 0.0
    %300 = vmatpush1.msra.mxu0 0.0
    %301 = vmatprep.subr.mxu0 0.0
    %302 = vmatpush1.msra.mxu0 0.0
    %303 = vmatprep.subr.mxu0 0.0
    %304 = vmatpush1.msra.mxu0 0.0
    %305 = vmatprep.subr.mxu0 0.0
    %306 = vmatpush1.msra.mxu0 0.0
    %307 = vmatprep.subr.mxu0 0.0
    %308 = vmatpush1.msra.mxu0 0.0
    %309 = vmatprep.subr.mxu0 0.0
    %310 = vmatpush1.msra.mxu0 0.0
    %311 = vmatprep.subr.mxu0 0.0
    %312 = vmatpush1.msra.mxu0 0.0
    %313 = vmatprep.subr.mxu0 0.0
    %314 = vmatpush1.msra.mxu0 0.0
    %315 = vmatprep.subr.mxu0 0.0
    %316 = vmatpush1.msra.mxu0 0.0
    %317 = vmatprep.subr.mxu0 0.0
    %318 = vmatpush1.msra.mxu0 0.0
    %319 = vmatprep.subr.mxu0 0.0
    %320 = vmatpush1.msra.mxu0 0.0
    %321 = vmatprep.subr.mxu0 0.0
    %322 = vmatpush1.msra.mxu0 0.0
    %323 = vmatprep.subr.mxu0 0.0
    %324 = vmatpush1.msra.mxu0 %v286
    %325 = vmatprep.subr.mxu0 0.0
    %326 = vmatpush1.msra.mxu0 %v284
    %327 = vmatprep.subr.mxu0 0.0
    %328 = vmatpush2.msra.mxu0 0.0
    %329 = vmatprep.subr.mxu0 0.0
    %330 = vmatpush2.msra.mxu0 0.0
    %331 = vmatprep.subr.mxu0 0.0
    %332 = vmatpush2.msra.mxu0 0.0
    %333 = vmatprep.subr.mxu0 0.0
    %334 = vmatpush2.msra.mxu0 0.0
    %335 = vmatprep.subr.mxu0 0.0
    %336 = vmatpush2.msra.mxu0 0.0
    %337 = vmatprep.subr.mxu0 0.0
    %338 = vmatpush2.msra.mxu0 0.0
    %339 = vmatprep.subr.mxu0 0.0
    %340 = vmatpush2.msra.mxu0 0.0
    %341 = vmatprep.subr.mxu0 0.0
    %342 = vmatpush2.msra.mxu0 0.0
    %343 = vmatprep.subr.mxu0 0.0
    %344 = vmatpush2.msra.mxu0 0.0
    %345 = vmatprep.subr.mxu0 0.0
    %346 = vmatpush2.msra.mxu0 0.0
    %347 = vmatprep.subr.mxu0 0.0
    %348 = vmatpush2.msra.mxu0 0.0
    %349 = vmatprep.subr.mxu0 0.0
    %350 = vmatpush2.msra.mxu0 0.0
    %351 = vmatprep.subr.mxu0 0.0
    %352 = vmatpush2.msra.mxu0 0.0
    %353 = vmatprep.subr.mxu0 0.0
    %354 = vmatpush2.msra.mxu0 0.0
    %355 = vmatprep.subr.mxu0 0.0
    %356 = vmatpush2.msra.mxu0 0.0
    %357 = vmatprep.subr.mxu0 0.0
    %358 = vmatpush2.msra.mxu0 0.0
    %359 = vmatprep.mubr.f32.mxu0 0.0
    %360 = vmatmul.mubr.f32.gmra.mxu0 %v290
    %v361 = vpop.f32.mrf.mxu0
    %v362 = vadd.f32 0.0, %v361
    %v363 = vpop.f32.mrf.mxu0
    %364 = vmatprep.mubr.f32.mxu0 0.0
    %365 = vmatmul.mubr.f32.gmra.mxu0 %v293
    %v366 = vpop.f32.mrf.mxu0
    %v367 = vadd.f32 0.0, %v366
    %v368 = vpop.f32.mrf.mxu0
    %369 = vdwg.mxu0
    %370 = vst.msk [vmem:[#allocation7] sm:$0xff] %vm169, %v362
    %371 = vst.msk [vmem:[#allocation7 + $0x8] sm:$0xff] %vm169, %v367
    // Predicated region
    $region18: #{tpu_custom_call.1} parent=1 // pred_check
      _
    $region19: #{tpu_custom_call.1} parent=1 // pred_check_branch
      %373 = sbr.rel (0) target = $region21
    $region20: #{tpu_custom_call.1} parent=1 // pred_region
      %s375 = ssub.s32 256, 256
      %376 = vsyncadd [#allocation4], %s375
      %s377 = sshll.u32 [#allocation7], 4
      %s378 = int_to_ptr.vmem [resolvable:$true] %s377
      %383 = dma.vmem_to_hbm [thread:$0]  %s378, 256, %s2, [#allocation4], 128, 128, 8
    $region21: #{tpu_custom_call.1} parent=1 // pred_fallthru
      _
    // Predicated region
    $region22: #{tpu_custom_call.1} parent=1 // pred_check
      _
    $region23: #{tpu_custom_call.1} parent=1 // pred_check_branch
      %385 = sbr.rel (0) target = $region25
    $region24: #{tpu_custom_call.1} parent=1 // pred_region
      %386 = dma.done [#allocation4], 256
    $region25: #{tpu_custom_call.1} parent=1 // pred_fallthru
      _
    %387 = vsyncpa [#allocation3], 1
    %388 = vsyncpa [#allocation6], 1
    %389 = vsyncpa [#allocation4], 1

</llo_original>
